<compile_context>
chip_gen: v6e
topology: v6e:2x2x1
jax: 0.10.0
libtpu: 0.0.40
codegen_flags: <defaults>
</compile_context>

<pallas_src>
import functools

import jax
import jax.numpy as jnp
from jax.experimental import pallas as pl
from jax.experimental.pallas import tpu as pltpu

LANE = 128      # vreg lane width
SUBLANE = 8     # vreg sublane count


def _round_up(n, m):
    return ((n + m - 1) // m) * m


def mlp_kernel(x_ref, w1_ref, b1_ref, w2_ref, b2_ref, o_ref):
    # Layer 1: (TILE_B, IN_pad) @ (IN_pad, HID_pad), f32 accumulation on MXU.
    h = jnp.dot(x_ref[...], w1_ref[...], preferred_element_type=jnp.float32)
    # Bias-add + ReLU in f32 on the VPU (lane-dense, unmasked).
    h = jnp.maximum(h + b1_ref[...], 0.0)
    # Layer 2: cast activations to the weight dtype only for the MXU feed.
    y = jnp.dot(h.astype(w2_ref.dtype), w2_ref[...],
                preferred_element_type=jnp.float32)
    o_ref[...] = (y + b2_ref[...]).astype(o_ref.dtype)


def prepare_params(w1, b1, w2, b2, matmul_dtype=jnp.float32):
    """One-time prep (hoisted out of the per-call path).

    w1: [hidden, input], b1: [hidden], w2: [output, hidden], b2: [output]
    (PyTorch nn.Linear layouts).  Returns lane-padded, pre-transposed params:
      w1p: [IN_pad, HID_pad], b1p: [1, HID_pad],
      w2p: [HID_pad, OUT_pad], b2p: [1, OUT_pad]
    Zero padding keeps the math exact; padded output columns are sliced off.
    """
    hidden, in_f = w1.shape
    out_f = w2.shape[0]
    in_pad = _round_up(in_f, LANE)
    hid_pad = _round_up(hidden, LANE)
    out_pad = _round_up(out_f, LANE)

    w1p = jnp.zeros((in_pad, hid_pad), jnp.float32).at[:in_f, :hidden].set(w1.T)
    w2p = jnp.zeros((hid_pad, out_pad), jnp.float32).at[:hidden, :out_f].set(w2.T)
    b1p = jnp.zeros((1, hid_pad), jnp.float32).at[0, :hidden].set(b1)
    b2p = jnp.zeros((1, out_pad), jnp.float32).at[0, :out_f].set(b2)

    # Only the MXU operands get the reduced dtype; biases stay f32.
    return w1p.astype(matmul_dtype), b1p, w2p.astype(matmul_dtype), b2p


@functools.partial(jax.jit, static_argnames=("out_features",))
def linear_qnet_forward(x, w1p, b1p, w2p, b2p, *, out_features):
    """x: [B, input_size] f32.  Returns [B, out_features] f32."""
    B, in_f = x.shape
    in_pad, hid_pad = w1p.shape
    out_pad = w2p.shape[1]

    # Batch tiling: small batches -> one sublane-aligned tile; large batches
    # -> 256-row tiles so x/o DMA pipelines against the two matmuls.
    tile_b = min(256, _round_up(B, SUBLANE))
    b_pad = _round_up(B, tile_b)

    # Lane/batch zero-padding of the activation (cheap, fused inside the jit).
    xp = jnp.zeros((b_pad, in_pad), w1p.dtype).at[:B, :in_f].set(
        x.astype(w1p.dtype))

    out = pl.pallas_call(
        mlp_kernel,
        out_shape=jax.ShapeDtypeStruct((b_pad, out_pad), jnp.float32),
        grid_spec=pltpu.PrefetchScalarGridSpec(
            num_scalar_prefetch=0,
            grid=(b_pad // tile_b,),
            in_specs=[
                pl.BlockSpec((tile_b, in_pad), lambda i: (i, 0)),   # x tile
                pl.BlockSpec((in_pad, hid_pad), lambda i: (0, 0)),  # W1 resident
                pl.BlockSpec((1, hid_pad), lambda i: (0, 0)),       # b1 resident
                pl.BlockSpec((hid_pad, out_pad), lambda i: (0, 0)), # W2 resident
                pl.BlockSpec((1, out_pad), lambda i: (0, 0)),       # b2 resident
            ],
            out_specs=pl.BlockSpec((tile_b, out_pad), lambda i: (i, 0)),
        ),
        compiler_params=pltpu.CompilerParams(
            dimension_semantics=("parallel",)),  # shard batch tiles across TCs
    )(xp, w1p, b1p, w2p, b2p)

    return out[:B, :out_features]


def init_linear(key, out_features, in_features):
    """Deterministic init mimicking torch.nn.Linear default (kaiming-uniform)."""
    kw, kb = jax.random.split(key)
    bound = 1.0 / jnp.sqrt(in_features)
    w = jax.random.uniform(kw, (out_features, in_features), jnp.float32,
                           minval=-bound, maxval=bound)
    b = jax.random.uniform(kb, (out_features,), jnp.float32,
                           minval=-bound, maxval=bound)
    return w, b


if __name__ == "__main__":
    # Snake agent shapes: 11 state features, 32 hidden units, 3 actions.
    INPUT, HIDDEN, OUTPUT = 11, 32, 3

    key = jax.random.PRNGKey(0)
    kx, k1, k2 = jax.random.split(key, 3)

    w1, b1 = init_linear(k1, HIDDEN, INPUT)
    w2, b2 = init_linear(k2, OUTPUT, HIDDEN)

    def ref_forward(x):
        return jnp.maximum(x @ w1.T + b1, 0.0) @ w2.T + b2

    # --- f32 path: small batch (action selection) and batched (replay) ---
    w1p, b1p, w2p, b2p = prepare_params(w1, b1, w2, b2,
                                        matmul_dtype=jnp.float32)
    for B in (4, 512):
        x = jax.random.normal(kx, (B, INPUT), jnp.float32)
        y = linear_qnet_forward(x, w1p, b1p, w2p, b2p, out_features=OUTPUT)
        y = jax.block_until_ready(y)
        assert y.shape == (B, OUTPUT)
        assert jnp.allclose(y, ref_forward(x), atol=1e-5, rtol=1e-5)

    # --- bf16 matmul operands (v6e MXU win), f32 accumulate / bias / ReLU ---
    w1b, b1b, w2b, b2b = prepare_params(w1, b1, w2, b2,
                                        matmul_dtype=jnp.bfloat16)
    x = jax.random.normal(kx, (256, INPUT), jnp.float32)
    y = linear_qnet_forward(x, w1b, b1b, w2b, b2b, out_features=OUTPUT)
    y = jax.block_until_ready(y)
    assert y.shape == (256, OUTPUT)
    assert jnp.allclose(y, ref_forward(x), atol=2e-2, rtol=2e-2)

    print("KERNEL_OK")
</pallas_src>

<mosaic_0001>
module attributes {stable_mosaic.version = 11 : i64} {
  func.func @mlp_kernel(%arg0: i32, %arg1: memref<8x128xf32, #tpu.memory_space<vmem>>, %arg2: memref<128x128xf32, #tpu.memory_space<vmem>>, %arg3: memref<1x128xf32, #tpu.memory_space<vmem>>, %arg4: memref<128x128xf32, #tpu.memory_space<vmem>>, %arg5: memref<1x128xf32, #tpu.memory_space<vmem>>, %arg6: memref<8x128xf32, #tpu.memory_space<vmem>>) attributes {dimension_semantics = [#tpu.dimension_semantics<parallel>], iteration_bounds = array<i64: 1>, scalar_prefetch = 0 : i64, scratch_operands = 0 : i64, tpu.core_type = #tpu.core_type<tc>, window_params = [{transform_indices = @transform_0, window_bounds = array<i64: 8, 128>}, {pipeline_mode = #tpu.pipeline_mode<synchronous>, transform_indices = @transform_1, window_bounds = array<i64: 128, 128>}, {pipeline_mode = #tpu.pipeline_mode<synchronous>, transform_indices = @transform_2, window_bounds = array<i64: 1, 128>}, {pipeline_mode = #tpu.pipeline_mode<synchronous>, transform_indices = @transform_3, window_bounds = array<i64: 128, 128>}, {pipeline_mode = #tpu.pipeline_mode<synchronous>, transform_indices = @transform_4, window_bounds = array<i64: 1, 128>}, {transform_indices = @transform_5, window_bounds = array<i64: 8, 128>}]} {
    %c0 = arith.constant 0 : index
    %c0_0 = arith.constant 0 : index
    %0 = vector.load %arg1[%c0, %c0_0] : memref<8x128xf32, #tpu.memory_space<vmem>>, vector<8x128xf32>
    %c0_1 = arith.constant 0 : index
    %c0_2 = arith.constant 0 : index
    %1 = vector.load %arg2[%c0_1, %c0_2] : memref<128x128xf32, #tpu.memory_space<vmem>>, vector<128x128xf32>
    %cst = arith.constant dense<0.000000e+00> : vector<8x128xf32>
    %2 = tpu.matmul %0, %1, %cst {dimension_numbers = #tpu.dot_dimension_numbers<[1], [0], [0], [1], [0, 0, 1, 1], [], []>} : vector<8x128xf32>, vector<128x128xf32>, vector<8x128xf32> -> vector<8x128xf32>
    %c0_3 = arith.constant 0 : index
    %c0_4 = arith.constant 0 : index
    %3 = vector.load %arg3[%c0_3, %c0_4] : memref<1x128xf32, #tpu.memory_space<vmem>>, vector<1x128xf32>
    %4 = vector.broadcast %3 : vector<1x128xf32> to vector<8x128xf32>
    %5 = arith.addf %2, %4 : vector<8x128xf32>
    %cst_5 = arith.constant 0.000000e+00 : f32
    %6 = vector.broadcast %cst_5 : f32 to vector<8x128xf32>
    %7 = arith.maximumf %5, %6 : vector<8x128xf32>
    %c0_6 = arith.constant 0 : index
    %c0_7 = arith.constant 0 : index
    %8 = vector.load %arg4[%c0_6, %c0_7] : memref<128x128xf32, #tpu.memory_space<vmem>>, vector<128x128xf32>
    %cst_8 = arith.constant dense<0.000000e+00> : vector<8x128xf32>
    %9 = tpu.matmul %7, %8, %cst_8 {dimension_numbers = #tpu.dot_dimension_numbers<[1], [0], [0], [1], [0, 0, 1, 1], [], []>} : vector<8x128xf32>, vector<128x128xf32>, vector<8x128xf32> -> vector<8x128xf32>
    %c0_9 = arith.constant 0 : index
    %c0_10 = arith.constant 0 : index
    %10 = vector.load %arg5[%c0_9, %c0_10] : memref<1x128xf32, #tpu.memory_space<vmem>>, vector<1x128xf32>
    %11 = vector.broadcast %10 : vector<1x128xf32> to vector<8x128xf32>
    %12 = arith.addf %9, %11 : vector<8x128xf32>
    %c0_11 = arith.constant 0 : index
    %c0_12 = arith.constant 0 : index
    %13 = vector.load %arg6[%c0_11, %c0_12] : memref<8x128xf32, #tpu.memory_space<vmem>>, vector<8x128xf32>
    tpu.vector_store %arg6[%c0_11, %c0_12], %12 {strides = array<i32>} : memref<8x128xf32, #tpu.memory_space<vmem>>, vector<8x128xf32>,
    return
  }
  func.func @transform_0(%arg0: i32) -> (i32, i32) {
    %c0_i32 = arith.constant 0 : i32
    %c0_i32_0 = arith.constant 0 : i32
    return %arg0, %c0_i32 : i32, i32
  }
  func.func @transform_1(%arg0: i32) -> (i32, i32) {
    %c0_i32 = arith.constant 0 : i32
    %c0_i32_0 = arith.constant 0 : i32
    %c0_i32_1 = arith.constant 0 : i32
    return %c0_i32, %c0_i32_0 : i32, i32
  }
  func.func @transform_2(%arg0: i32) -> (i32, i32) {
    %c0_i32 = arith.constant 0 : i32
    %c0_i32_0 = arith.constant 0 : i32
    %c0_i32_1 = arith.constant 0 : i32
    return %c0_i32, %c0_i32_0 : i32, i32
  }
  func.func @transform_3(%arg0: i32) -> (i32, i32) {
    %c0_i32 = arith.constant 0 : i32
    %c0_i32_0 = arith.constant 0 : i32
    %c0_i32_1 = arith.constant 0 : i32
    return %c0_i32, %c0_i32_0 : i32, i32
  }
  func.func @transform_4(%arg0: i32) -> (i32, i32) {
    %c0_i32 = arith.constant 0 : i32
    %c0_i32_0 = arith.constant 0 : i32
    %c0_i32_1 = arith.constant 0 : i32
    return %c0_i32, %c0_i32_0 : i32, i32
  }
  func.func @transform_5(%arg0: i32) -> (i32, i32) {
    %c0_i32 = arith.constant 0 : i32
    %c0_i32_0 = arith.constant 0 : i32
    return %arg0, %c0_i32 : i32, i32
  }
}

</mosaic_0001>

<llo_original>
// kernel: linear_qnet_forward.1
$region0: #{linear_qnet_forward.1}
  #allocation0 [shape = 'u32[]', space=smem, size = 0x4, offset = 0x4, fixed_abs, tag = 'smem constant byte address 0x4 - core index']
  #allocation1 [shape = 'u32[144,128]{1,0:T(1,128)}', space=vmem, size = 0x12000, scoped, tag = 'internal scratch']
  %s0 = inlined_call_operand.vmem [shape: f32[8,128], index: 0, kind: input, shape index: {}]
  %s1 = inlined_call_operand.hbm [shape: f32[128,128], index: 1, kind: input, shape index: {}]
  %s2 = inlined_call_operand.vmem [shape: f32[1,128], index: 2, kind: input, shape index: {}]
  %s3 = inlined_call_operand.hbm [shape: f32[128,128], index: 3, kind: input, shape index: {}]
  %s4 = inlined_call_operand.vmem [shape: f32[1,128], index: 4, kind: input, shape index: {}]
  %s5 = inlined_call_operand.vmem [shape: f32[8,128], index: 5, kind: output, shape index: {}]
  %s6 = sld [smem:[#allocation0]]
  $region38: #{linear_qnet_forward.1} parent=0
    _
  %s8 = ssub.s32 1, %s6
  %s9 = scalar_select 0, %s8, %s6
  $region1: #{linear_qnet_forward.1} parent=0
    #allocation2 [shape = 'u8[65536]{0}', space=vmem, size = 0x10000, scoped, tag = 'input window, operand 1, single buffered']
    #allocation3 [shape = 's32[1]{0}', space=sflag, size = 0x4, scoped, tag = 'scoped memory for linear_qnet_forward.1']
    #allocation4 [shape = 'u8[65536]{0}', space=vmem, size = 0x10000, scoped, tag = 'input window, operand 3, single buffered']
    #allocation5 [shape = 's32[1]{0}', space=sflag, size = 0x4, scoped, tag = 'scoped memory for linear_qnet_forward.1']
    %10 = vsyncpa [#allocation3], 0
    %11 = vsyncpa [#allocation5], 0
    // Predicated region
    $region2: #{linear_qnet_forward.1} parent=1 // pred_check
      _
    $region3: #{linear_qnet_forward.1} parent=1 // pred_check_branch
      %13 = sbr.rel (0) target = $region5
    $region4: #{linear_qnet_forward.1} parent=1 // pred_region
      _
    $region5: #{linear_qnet_forward.1} parent=1 // pred_fallthru
      _
    // Predicated region
    $region6: #{linear_qnet_forward.1} parent=1 // pred_check
      _
    $region7: #{linear_qnet_forward.1} parent=1 // pred_check_branch
      %15 = sbr.rel (0) target = $region9
    $region8: #{linear_qnet_forward.1} parent=1 // pred_region
      %s17 = ssub.s32 2048, 2048
      %18 = vsyncadd [#allocation3], %s17
      %s19 = sshll.u32 [#allocation2], 4
      %s20 = int_to_ptr.vmem [resolvable:$true] %s19
      %25 = dma.hbm_to_vmem [thread:$0]  %s1, 2048, %s20, [#allocation3], 128, 128, 8
    $region9: #{linear_qnet_forward.1} parent=1 // pred_fallthru
      _
    // Predicated region
    $region10: #{linear_qnet_forward.1} parent=1 // pred_check
      _
    $region11: #{linear_qnet_forward.1} parent=1 // pred_check_branch
      %27 = sbr.rel (0) target = $region13
    $region12: #{linear_qnet_forward.1} parent=1 // pred_region
      _
    $region13: #{linear_qnet_forward.1} parent=1 // pred_fallthru
      _
    // Predicated region
    $region14: #{linear_qnet_forward.1} parent=1 // pred_check
      _
    $region15: #{linear_qnet_forward.1} parent=1 // pred_check_branch
      %29 = sbr.rel (0) target = $region17
    $region16: #{linear_qnet_forward.1} parent=1 // pred_region
      %s31 = ssub.s32 2048, 2048
      %32 = vsyncadd [#allocation5], %s31
      %s33 = sshll.u32 [#allocation4], 4
      %s34 = int_to_ptr.vmem [resolvable:$true] %s33
      %39 = dma.hbm_to_vmem [thread:$0]  %s3, 2048, %s34, [#allocation5], 128, 128, 8
    $region17: #{linear_qnet_forward.1} parent=1 // pred_fallthru
      _
    // Predicated region
    $region18: #{linear_qnet_forward.1} parent=1 // pred_check
      _
    $region19: #{linear_qnet_forward.1} parent=1 // pred_check_branch
      %41 = sbr.rel (0) target = $region21
    $region20: #{linear_qnet_forward.1} parent=1 // pred_region
      _
    $region21: #{linear_qnet_forward.1} parent=1 // pred_fallthru
      _
    // Predicated region
    $region22: #{linear_qnet_forward.1} parent=1 // pred_check
      _
    $region23: #{linear_qnet_forward.1} parent=1 // pred_check_branch
      %43 = sbr.rel (0) target = $region25
    $region24: #{linear_qnet_forward.1} parent=1 // pred_region
      %44 = dma.done [#allocation3], 2048
    $region25: #{linear_qnet_forward.1} parent=1 // pred_fallthru
      _
    // Predicated region
    $region26: #{linear_qnet_forward.1} parent=1 // pred_check
      _
    $region27: #{linear_qnet_forward.1} parent=1 // pred_check_branch
      %46 = sbr.rel (0) target = $region29
    $region28: #{linear_qnet_forward.1} parent=1 // pred_region
      %47 = dma.done [#allocation5], 2048
    $region29: #{linear_qnet_forward.1} parent=1 // pred_fallthru
      _
    %v48 = vld [vmem:[%s0] sm:$0xff]
    %v49 = vld [vmem:[#allocation2] sm:$0xff]
    %v50 = vld [vmem:[#allocation2 + $0x8] sm:$0xff]
    %v51 = vld [vmem:[#allocation2 + $0x10] sm:$0xff]
    %v52 = vld [vmem:[#allocation2 + $0x18] sm:$0xff]
    %v53 = vld [vmem:[#allocation2 + $0x20] sm:$0xff]
    %v54 = vld [vmem:[#allocation2 + $0x28] sm:$0xff]
    %v55 = vld [vmem:[#allocation2 + $0x30] sm:$0xff]
    %v56 = vld [vmem:[#allocation2 + $0x38] sm:$0xff]
    %v57 = vld [vmem:[#allocation2 + $0x40] sm:$0xff]
    %v58 = vld [vmem:[#allocation2 + $0x48] sm:$0xff]
    %v59 = vld [vmem:[#allocation2 + $0x50] sm:$0xff]
    %v60 = vld [vmem:[#allocation2 + $0x58] sm:$0xff]
    %v61 = vld [vmem:[#allocation2 + $0x60] sm:$0xff]
    %v62 = vld [vmem:[#allocation2 + $0x68] sm:$0xff]
    %v63 = vld [vmem:[#allocation2 + $0x70] sm:$0xff]
    %v64 = vld [vmem:[#allocation2 + $0x78] sm:$0xff]
    %v65 = vld [vmem:[%s2] sm:$0x1]
    %v67 = vlaneseq
    %v68 = vshrl.u32 %v67, 7
    %v69 = vsub.s32 0, %v68
    %v70 = vrot.slane %v65, %v69
    %72 = vmatprep.subr.mxu0 0.0
    %73 = vmatpush1.msra.mxu0 %v64
    %74 = vmatprep.subr.mxu0 0.0
    %75 = vmatpush1.msra.mxu0 %v63
    %76 = vmatprep.subr.mxu0 0.0
    %77 = vmatpush1.msra.mxu0 %v62
    %78 = vmatprep.subr.mxu0 0.0
    %79 = vmatpush1.msra.mxu0 %v61
    %80 = vmatprep.subr.mxu0 0.0
    %81 = vmatpush1.msra.mxu0 %v60
    %82 = vmatprep.subr.mxu0 0.0
    %83 = vmatpush1.msra.mxu0 %v59
    %84 = vmatprep.subr.mxu0 0.0
    %85 = vmatpush1.msra.mxu0 %v58
    %86 = vmatprep.subr.mxu0 0.0
    %87 = vmatpush1.msra.mxu0 %v57
    %88 = vmatprep.subr.mxu0 0.0
    %89 = vmatpush1.msra.mxu0 %v56
    %90 = vmatprep.subr.mxu0 0.0
    %91 = vmatpush1.msra.mxu0 %v55
    %92 = vmatprep.subr.mxu0 0.0
    %93 = vmatpush1.msra.mxu0 %v54
    %94 = vmatprep.subr.mxu0 0.0
    %95 = vmatpush1.msra.mxu0 %v53
    %96 = vmatprep.subr.mxu0 0.0
    %97 = vmatpush1.msra.mxu0 %v52
    %98 = vmatprep.subr.mxu0 0.0
    %99 = vmatpush1.msra.mxu0 %v51
    %100 = vmatprep.subr.mxu0 0.0
    %101 = vmatpush1.msra.mxu0 %v50
    %102 = vmatprep.subr.mxu0 0.0
    %103 = vmatpush1.msra.mxu0 %v49
    %104 = vmatprep.subr.mxu0 0.0
    %105 = vmatpush2.msra.mxu0 0.0
    %106 = vmatprep.subr.mxu0 0.0
    %107 = vmatpush2.msra.mxu0 0.0
    %108 = vmatprep.subr.mxu0 0.0
    %109 = vmatpush2.msra.mxu0 0.0
    %110 = vmatprep.subr.mxu0 0.0
    %111 = vmatpush2.msra.mxu0 0.0
    %112 = vmatprep.subr.mxu0 0.0
    %113 = vmatpush2.msra.mxu0 0.0
    %114 = vmatprep.subr.mxu0 0.0
    %115 = vmatpush2.msra.mxu0 0.0
    %116 = vmatprep.subr.mxu0 0.0
    %117 = vmatpush2.msra.mxu0 0.0
    %118 = vmatprep.subr.mxu0 0.0
    %119 = vmatpush2.msra.mxu0 0.0
    %120 = vmatprep.subr.mxu0 0.0
    %121 = vmatpush2.msra.mxu0 0.0
    %122 = vmatprep.subr.mxu0 0.0
    %123 = vmatpush2.msra.mxu0 0.0
    %124 = vmatprep.subr.mxu0 0.0
    %125 = vmatpush2.msra.mxu0 0.0
    %126 = vmatprep.subr.mxu0 0.0
    %127 = vmatpush2.msra.mxu0 0.0
    %128 = vmatprep.subr.mxu0 0.0
    %129 = vmatpush2.msra.mxu0 0.0
    %130 = vmatprep.subr.mxu0 0.0
    %131 = vmatpush2.msra.mxu0 0.0
    %132 = vmatprep.subr.mxu0 0.0
    %133 = vmatpush2.msra.mxu0 0.0
    %134 = vmatprep.subr.mxu0 0.0
    %135 = vmatpush2.msra.mxu0 0.0
    %136 = vmatprep.mubr.f32.mxu0 0.0
    %137 = vmatmul.mubr.f32.gmra.mxu0 %v48
    %v138 = vpop.f32.mrf.mxu0
    %v139 = vadd.f32 %v70, %v138
    %v140 = vpop.f32.mrf.mxu0
    %141 = vdwg.mxu0
    %v142 = vmax.f32 %v139, 0.0
    %v143 = vld [vmem:[#allocation4] sm:$0xff]
    %v144 = vld [vmem:[#allocation4 + $0x8] sm:$0xff]
    %v145 = vld [vmem:[#allocation4 + $0x10] sm:$0xff]
    %v146 = vld [vmem:[#allocation4 + $0x18] sm:$0xff]
    %v147 = vld [vmem:[#allocation4 + $0x20] sm:$0xff]
    %v148 = vld [vmem:[#allocation4 + $0x28] sm:$0xff]
    %v149 = vld [vmem:[#allocation4 + $0x30] sm:$0xff]
    %v150 = vld [vmem:[#allocation4 + $0x38] sm:$0xff]
    %v151 = vld [vmem:[#allocation4 + $0x40] sm:$0xff]
    %v152 = vld [vmem:[#allocation4 + $0x48] sm:$0xff]
    %v153 = vld [vmem:[#allocation4 + $0x50] sm:$0xff]
    %v154 = vld [vmem:[#allocation4 + $0x58] sm:$0xff]
    %v155 = vld [vmem:[#allocation4 + $0x60] sm:$0xff]
    %v156 = vld [vmem:[#allocation4 + $0x68] sm:$0xff]
    %v157 = vld [vmem:[#allocation4 + $0x70] sm:$0xff]
    %v158 = vld [vmem:[#allocation4 + $0x78] sm:$0xff]
    %v159 = vld [vmem:[%s4] sm:$0x1]
    %v161 = vlaneseq
    %v162 = vshrl.u32 %v161, 7
    %v163 = vsub.s32 0, %v162
    %v164 = vrot.slane %v159, %v163
    %166 = vmatprep.subr.mxu0 0.0
    %167 = vmatpush1.msra.mxu0 %v158
    %168 = vmatprep.subr.mxu0 0.0
    %169 = vmatpush1.msra.mxu0 %v157
    %170 = vmatprep.subr.mxu0 0.0
    %171 = vmatpush1.msra.mxu0 %v156
    %172 = vmatprep.subr.mxu0 0.0
    %173 = vmatpush1.msra.mxu0 %v155
    %174 = vmatprep.subr.mxu0 0.0
    %175 = vmatpush1.msra.mxu0 %v154
    %176 = vmatprep.subr.mxu0 0.0
    %177 = vmatpush1.msra.mxu0 %v153
    %178 = vmatprep.subr.mxu0 0.0
    %179 = vmatpush1.msra.mxu0 %v152
    %180 = vmatprep.subr.mxu0 0.0
    %181 = vmatpush1.msra.mxu0 %v151
    %182 = vmatprep.subr.mxu0 0.0
    %183 = vmatpush1.msra.mxu0 %v150
    %184 = vmatprep.subr.mxu0 0.0
    %185 = vmatpush1.msra.mxu0 %v149
    %186 = vmatprep.subr.mxu0 0.0
    %187 = vmatpush1.msra.mxu0 %v148
    %188 = vmatprep.subr.mxu0 0.0
    %189 = vmatpush1.msra.mxu0 %v147
    %190 = vmatprep.subr.mxu0 0.0
    %191 = vmatpush1.msra.mxu0 %v146
    %192 = vmatprep.subr.mxu0 0.0
    %193 = vmatpush1.msra.mxu0 %v145
    %194 = vmatprep.subr.mxu0 0.0
    %195 = vmatpush1.msra.mxu0 %v144
    %196 = vmatprep.subr.mxu0 0.0
    %197 = vmatpush1.msra.mxu0 %v143
    %198 = vmatprep.subr.mxu0 0.0
    %199 = vmatpush2.msra.mxu0 0.0
    %200 = vmatprep.subr.mxu0 0.0
    %201 = vmatpush2.msra.mxu0 0.0
    %202 = vmatprep.subr.mxu0 0.0
    %203 = vmatpush2.msra.mxu0 0.0
    %204 = vmatprep.subr.mxu0 0.0
    %205 = vmatpush2.msra.mxu0 0.0
    %206 = vmatprep.subr.mxu0 0.0
    %207 = vmatpush2.msra.mxu0 0.0
    %208 = vmatprep.subr.mxu0 0.0
    %209 = vmatpush2.msra.mxu0 0.0
    %210 = vmatprep.subr.mxu0 0.0
    %211 = vmatpush2.msra.mxu0 0.0
    %212 = vmatprep.subr.mxu0 0.0
    %213 = vmatpush2.msra.mxu0 0.0
    %214 = vmatprep.subr.mxu0 0.0
    %215 = vmatpush2.msra.mxu0 0.0
    %216 = vmatprep.subr.mxu0 0.0
    %217 = vmatpush2.msra.mxu0 0.0
    %218 = vmatprep.subr.mxu0 0.0
    %219 = vmatpush2.msra.mxu0 0.0
    %220 = vmatprep.subr.mxu0 0.0
    %221 = vmatpush2.msra.mxu0 0.0
    %222 = vmatprep.subr.mxu0 0.0
    %223 = vmatpush2.msra.mxu0 0.0
    %224 = vmatprep.subr.mxu0 0.0
    %225 = vmatpush2.msra.mxu0 0.0
    %226 = vmatprep.subr.mxu0 0.0
    %227 = vmatpush2.msra.mxu0 0.0
    %228 = vmatprep.subr.mxu0 0.0
    %229 = vmatpush2.msra.mxu0 0.0
    %230 = vmatprep.mubr.f32.mxu0 0.0
    %231 = vmatmul.mubr.f32.gmra.mxu0 %v142
    %v232 = vpop.f32.mrf.mxu0
    %v233 = vadd.f32 %v164, %v232
    %v234 = vpop.f32.mrf.mxu0
    %235 = vdwg.mxu0
    %236 = vst [vmem:[%s5] sm:$0xff] %v233
    // Predicated region
    $region30: #{linear_qnet_forward.1} parent=1 // pred_check
      _
    $region31: #{linear_qnet_forward.1} parent=1 // pred_check_branch
      %238 = sbr.rel (0) target = $region33
    $region32: #{linear_qnet_forward.1} parent=1 // pred_region
      _
    $region33: #{linear_qnet_forward.1} parent=1 // pred_fallthru
      _
    // Predicated region
    $region34: #{linear_qnet_forward.1} parent=1 // pred_check
      _
    $region35: #{linear_qnet_forward.1} parent=1 // pred_check_branch
      %240 = sbr.rel (0) target = $region37
    $region36: #{linear_qnet_forward.1} parent=1 // pred_region
      _
    $region37: #{linear_qnet_forward.1} parent=1 // pred_fallthru
      _
    %241 = vsyncpa [#allocation3], 1
    %242 = vsyncpa [#allocation5], 1

</llo_original>
